<compile_context>
chip_gen: v5e
topology: v5e:2x2
jax: 0.10.0
libtpu: 0.0.40
codegen_flags: <defaults>
</compile_context>

<pallas_src>
import jax
import jax.numpy as jnp
from jax.experimental import pallas as pl
from jax.experimental.pallas import tpu as pltpu


_SQRT_HALF = 0.7071067811865476


# ----------------------------- kernel math ----------------------------------

def _erf_f32(x):
    # Abramowitz & Stegun 7.1.26 rational approximation, |err| <= 1.5e-7 (f32-accurate).
    # Only mul/add/exp/select -> VPU + EUP on every TPU generation.
    t = 1.0 / (1.0 + 0.3275911 * jnp.abs(x))
    poly = ((((1.061405429 * t - 1.453152027) * t + 1.421413741) * t
             - 0.284496736) * t + 0.254829592) * t
    y = 1.0 - poly * jnp.exp(-x * x)
    return jnp.where(x >= 0.0, y, -y)


def _gelu_exact(x):
    # PyTorch nn.GELU() default (exact, erf-based), f32.
    return 0.5 * x * (1.0 + _erf_f32(x * _SQRT_HALF))


def mlp_kernel(x_ref, w1_ref, b1_ref, w2_ref, b2_ref, w3_ref, b3_ref,
               w4_ref, b4_ref, o_ref):
    # x block: (TB, D_pad) f32.  Weights: bf16 (in, out) lane-padded.  Biases: f32 (1, out).
    x = x_ref[...]

    h = jnp.dot(x.astype(jnp.bfloat16), w1_ref[...],
                preferred_element_type=jnp.float32) + b1_ref[...]
    h = _gelu_exact(h)

    h = jnp.dot(h.astype(jnp.bfloat16), w2_ref[...],
                preferred_element_type=jnp.float32) + b2_ref[...]
    h = _gelu_exact(h)

    h = jnp.dot(h.astype(jnp.bfloat16), w3_ref[...],
                preferred_element_type=jnp.float32) + b3_ref[...]
    h = _gelu_exact(h)

    z = jnp.dot(h.astype(jnp.bfloat16), w4_ref[...],
                preferred_element_type=jnp.float32) + b4_ref[...]

    # sigmoid(z) == 0.5*(tanh(z/2)+1): single EUP tanh, no exp+divide chain.
    o_ref[...] = 0.5 * (jnp.tanh(0.5 * z) + 1.0)


# ----------------------------- wrapper ---------------------------------------

def _round_up(n, m):
    return ((n + m - 1) // m) * m


def _pick_tile_b(B):
    # Batch tile sized for the smallest-VMEM generation (v7x: 64 MiB physical,
    # 32 MiB default scoped).  Live f32 intermediates ~ TB*(512+256+128+128)*4 B
    # plus double-buffered x/out blocks -> < 8 MiB at TB=1024.
    TB_MAX = 1024
    if B <= TB_MAX:
        return _round_up(B, 8)
    return TB_MAX


def prepare_params(torch_layers, d_in):
    """One-time layout plumbing (zero per-call cost).

    torch_layers: list of (w: (out, in), b: (out,)) in PyTorch Linear layout.
    Returns [w1, b1, ..., w4, b4] with weights transposed to (in, out), zero-padded so
    every matmul dimension is a multiple of 128 (including D_in and the final output),
    weights stored bf16 (native MXU rate on v5e/v6e/v7x) and biases f32.
    """
    flat = []
    in_pad = _round_up(d_in, 128)
    for (w, b) in torch_layers:
        out, real_in = w.shape
        out_pad = _round_up(out, 128)
        wt = (jnp.zeros((in_pad, out_pad), jnp.float32)
              .at[:real_in, :out].set(w.T.astype(jnp.float32))
              .astype(jnp.bfloat16))
        bp = jnp.zeros((1, out_pad), jnp.float32).at[0, :out].set(
            b.astype(jnp.float32))
        flat += [wt, bp]
        in_pad = out_pad
    return flat


@jax.jit
def mlp_forward(x, flat_params):
    """x: (B, D_in) float32 -> (B, 1) float32."""
    B, d_in = x.shape
    d_pad = flat_params[0].shape[0]        # padded input width (multiple of 128)
    out_pad = flat_params[-2].shape[1]     # padded final width (128)

    TB = _pick_tile_b(B)
    B_pad = _round_up(B, TB)
    x_p = jnp.pad(x, ((0, B_pad - B), (0, d_pad - d_in)))

    # x / out tiled over the batch grid; weights & biases VMEM-resident via constant maps.
    in_specs = [pl.BlockSpec((TB, d_pad), lambda i: (i, 0))]
    for p in flat_params:
        in_specs.append(pl.BlockSpec(p.shape, lambda i: (0, 0)))

    out_full = pl.pallas_call(
        mlp_kernel,
        out_shape=jax.ShapeDtypeStruct((B_pad, out_pad), jnp.float32),
        grid=(B_pad // TB,),
        in_specs=in_specs,
        out_specs=pl.BlockSpec((TB, out_pad), lambda i: (i, 0)),
        compiler_params=pltpu.CompilerParams(
            dimension_semantics=("parallel",)),   # shards batch across v7x's 2 TCs
    )(x_p, *flat_params)

    return out_full[:B, :1]


# ----------------------------- pure-JAX reference -----------------------------

def reference(x, torch_layers):
    # Exact f32 reference (PyTorch-default exact GELU, identity dropout).
    h = x.astype(jnp.float32)
    for li, (w, b) in enumerate(torch_layers):
        h = h @ w.T + b
        if li < len(torch_layers) - 1:
            h = jax.nn.gelu(h, approximate=False)
    return jax.nn.sigmoid(h)


# ----------------------------- param construction -----------------------------

def make_torch_layers(key, d_in, widths=(400, 200, 50, 1)):
    layers = []
    fan_in = d_in
    for w_out in widths:
        key, kw, kb = jax.random.split(key, 3)
        bound = 1.0 / (fan_in ** 0.5)
        w = jax.random.uniform(kw, (w_out, fan_in), jnp.float32, -bound, bound)
        b = jax.random.uniform(kb, (w_out,), jnp.float32, -bound, bound)
        layers.append((w, b))
        fan_in = w_out
    return layers


# ----------------------------- main -------------------------------------------

if __name__ == "__main__":
    B, D_IN = 8, 32

    key = jax.random.PRNGKey(0)
    kx, kp = jax.random.split(key)
    x = jax.random.normal(kx, (B, D_IN), dtype=jnp.float32)
    torch_layers = make_torch_layers(kp, D_IN)          # PyTorch-layout params
    flat_params = prepare_params(torch_layers, D_IN)    # one-time padded/transposed/bf16

    out = mlp_forward(x, flat_params)
    out = jax.block_until_ready(out)

    ref = reference(x, torch_layers)
    assert out.shape == (B, 1)
    max_err = float(jnp.max(jnp.abs(out - ref)))
    # bf16 matmul operands (f32 accumulation) vs exact-f32 reference: sigmoid-bounded
    # output stays within a few 1e-3; 3e-2 is a comfortable margin.
    assert jnp.allclose(out, ref, atol=3e-2, rtol=0.0), f"max abs err {max_err}"

    print("KERNEL_OK")
</pallas_src>

<mosaic_0001>
module attributes {stable_mosaic.version = 11 : i64} {
  func.func @mlp_kernel(%arg0: i32, %arg1: memref<8x128xf32, #tpu.memory_space<vmem>>, %arg2: memref<128x512xbf16, #tpu.memory_space<vmem>>, %arg3: memref<1x512xf32, #tpu.memory_space<vmem>>, %arg4: memref<512x256xbf16, #tpu.memory_space<vmem>>, %arg5: memref<1x256xf32, #tpu.memory_space<vmem>>, %arg6: memref<256x128xbf16, #tpu.memory_space<vmem>>, %arg7: memref<1x128xf32, #tpu.memory_space<vmem>>, %arg8: memref<128x128xbf16, #tpu.memory_space<vmem>>, %arg9: memref<1x128xf32, #tpu.memory_space<vmem>>, %arg10: memref<8x128xf32, #tpu.memory_space<vmem>>) attributes {dimension_semantics = [#tpu.dimension_semantics<parallel>], iteration_bounds = array<i64: 1>, scalar_prefetch = 0 : i64, scratch_operands = 0 : i64, tpu.core_type = #tpu.core_type<tc>, window_params = [{transform_indices = @transform_0, window_bounds = array<i64: 8, 128>}, {pipeline_mode = #tpu.pipeline_mode<synchronous>, transform_indices = @transform_1, window_bounds = array<i64: 128, 512>}, {pipeline_mode = #tpu.pipeline_mode<synchronous>, transform_indices = @transform_2, window_bounds = array<i64: 1, 512>}, {pipeline_mode = #tpu.pipeline_mode<synchronous>, transform_indices = @transform_3, window_bounds = array<i64: 512, 256>}, {pipeline_mode = #tpu.pipeline_mode<synchronous>, transform_indices = @transform_4, window_bounds = array<i64: 1, 256>}, {pipeline_mode = #tpu.pipeline_mode<synchronous>, transform_indices = @transform_5, window_bounds = array<i64: 256, 128>}, {pipeline_mode = #tpu.pipeline_mode<synchronous>, transform_indices = @transform_6, window_bounds = array<i64: 1, 128>}, {pipeline_mode = #tpu.pipeline_mode<synchronous>, transform_indices = @transform_7, window_bounds = array<i64: 128, 128>}, {pipeline_mode = #tpu.pipeline_mode<synchronous>, transform_indices = @transform_8, window_bounds = array<i64: 1, 128>}, {transform_indices = @transform_9, window_bounds = array<i64: 8, 128>}]} {
    %c0 = arith.constant 0 : index
    %c0_0 = arith.constant 0 : index
    %0 = vector.load %arg1[%c0, %c0_0] : memref<8x128xf32, #tpu.memory_space<vmem>>, vector<8x128xf32>
    %1 = arith.truncf %0 : vector<8x128xf32> to vector<8x128xbf16>
    %c0_1 = arith.constant 0 : index
    %c0_2 = arith.constant 0 : index
    %2 = vector.load %arg2[%c0_1, %c0_2] : memref<128x512xbf16, #tpu.memory_space<vmem>>, vector<128x512xbf16>
    %cst = arith.constant dense<0.000000e+00> : vector<8x512xf32>
    %3 = tpu.matmul %1, %2, %cst {dimension_numbers = #tpu.dot_dimension_numbers<[1], [0], [0], [1], [0, 0, 1, 1], [], []>} : vector<8x128xbf16>, vector<128x512xbf16>, vector<8x512xf32> -> vector<8x512xf32>
    %c0_3 = arith.constant 0 : index
    %c0_4 = arith.constant 0 : index
    %4 = vector.load %arg3[%c0_3, %c0_4] : memref<1x512xf32, #tpu.memory_space<vmem>>, vector<1x512xf32>
    %5 = vector.broadcast %4 : vector<1x512xf32> to vector<8x512xf32>
    %6 = arith.addf %3, %5 : vector<8x512xf32>
    %cst_5 = arith.constant 5.000000e-01 : f32
    %7 = vector.broadcast %cst_5 : f32 to vector<8x512xf32>
    %8 = arith.mulf %7, %6 : vector<8x512xf32>
    %cst_6 = arith.constant 0.707106769 : f32
    %9 = vector.broadcast %cst_6 : f32 to vector<8x512xf32>
    %10 = arith.mulf %6, %9 : vector<8x512xf32>
    %11 = math.absf %10 : vector<8x512xf32>
    %cst_7 = arith.constant 0.327591091 : f32
    %12 = vector.broadcast %cst_7 : f32 to vector<8x512xf32>
    %13 = arith.mulf %12, %11 : vector<8x512xf32>
    %cst_8 = arith.constant 1.000000e+00 : f32
    %14 = vector.broadcast %cst_8 : f32 to vector<8x512xf32>
    %15 = arith.addf %14, %13 : vector<8x512xf32>
    %cst_9 = arith.constant 1.000000e+00 : f32
    %16 = vector.broadcast %cst_9 : f32 to vector<8x512xf32>
    %17 = arith.divf %16, %15 : vector<8x512xf32>
    %cst_10 = arith.constant 1.06140542 : f32
    %18 = vector.broadcast %cst_10 : f32 to vector<8x512xf32>
    %19 = arith.mulf %18, %17 : vector<8x512xf32>
    %cst_11 = arith.constant 1.45315206 : f32
    %20 = vector.broadcast %cst_11 : f32 to vector<8x512xf32>
    %21 = arith.subf %19, %20 : vector<8x512xf32>
    %22 = arith.mulf %21, %17 : vector<8x512xf32>
    %cst_12 = arith.constant 1.42141378 : f32
    %23 = vector.broadcast %cst_12 : f32 to vector<8x512xf32>
    %24 = arith.addf %22, %23 : vector<8x512xf32>
    %25 = arith.mulf %24, %17 : vector<8x512xf32>
    %cst_13 = arith.constant 0.284496725 : f32
    %26 = vector.broadcast %cst_13 : f32 to vector<8x512xf32>
    %27 = arith.subf %25, %26 : vector<8x512xf32>
    %28 = arith.mulf %27, %17 : vector<8x512xf32>
    %cst_14 = arith.constant 0.254829586 : f32
    %29 = vector.broadcast %cst_14 : f32 to vector<8x512xf32>
    %30 = arith.addf %28, %29 : vector<8x512xf32>
    %31 = arith.mulf %30, %17 : vector<8x512xf32>
    %cst_15 = arith.constant 0.000000e+00 : f32
    %32 = vector.broadcast %cst_15 : f32 to vector<8x512xf32>
    %33 = arith.subf %32, %10 : vector<8x512xf32>
    %34 = arith.mulf %33, %10 : vector<8x512xf32>
    %35 = math.exp %34 : vector<8x512xf32>
    %36 = arith.mulf %31, %35 : vector<8x512xf32>
    %cst_16 = arith.constant 1.000000e+00 : f32
    %37 = vector.broadcast %cst_16 : f32 to vector<8x512xf32>
    %38 = arith.subf %37, %36 : vector<8x512xf32>
    %cst_17 = arith.constant 0.000000e+00 : f32
    %39 = vector.broadcast %cst_17 : f32 to vector<8x512xf32>
    %40 = arith.cmpf oge, %10, %39 : vector<8x512xf32>
    %cst_18 = arith.constant 0.000000e+00 : f32
    %41 = vector.broadcast %cst_18 : f32 to vector<8x512xf32>
    %42 = arith.subf %41, %38 : vector<8x512xf32>
    %43 = arith.select %40, %38, %42 : vector<8x512xi1>, vector<8x512xf32>
    %cst_19 = arith.constant 1.000000e+00 : f32
    %44 = vector.broadcast %cst_19 : f32 to vector<8x512xf32>
    %45 = arith.addf %44, %43 : vector<8x512xf32>
    %46 = arith.mulf %8, %45 : vector<8x512xf32>
    %47 = arith.truncf %46 : vector<8x512xf32> to vector<8x512xbf16>
    %c0_20 = arith.constant 0 : index
    %c0_21 = arith.constant 0 : index
    %48 = vector.load %arg4[%c0_20, %c0_21] : memref<512x256xbf16, #tpu.memory_space<vmem>>, vector<512x256xbf16>
    %cst_22 = arith.constant dense<0.000000e+00> : vector<8x256xf32>
    %49 = tpu.matmul %47, %48, %cst_22 {dimension_numbers = #tpu.dot_dimension_numbers<[1], [0], [0], [1], [0, 0, 1, 1], [], []>} : vector<8x512xbf16>, vector<512x256xbf16>, vector<8x256xf32> -> vector<8x256xf32>
    %c0_23 = arith.constant 0 : index
    %c0_24 = arith.constant 0 : index
    %50 = vector.load %arg5[%c0_23, %c0_24] : memref<1x256xf32, #tpu.memory_space<vmem>>, vector<1x256xf32>
    %51 = vector.broadcast %50 : vector<1x256xf32> to vector<8x256xf32>
    %52 = arith.addf %49, %51 : vector<8x256xf32>
    %cst_25 = arith.constant 5.000000e-01 : f32
    %53 = vector.broadcast %cst_25 : f32 to vector<8x256xf32>
    %54 = arith.mulf %53, %52 : vector<8x256xf32>
    %cst_26 = arith.constant 0.707106769 : f32
    %55 = vector.broadcast %cst_26 : f32 to vector<8x256xf32>
    %56 = arith.mulf %52, %55 : vector<8x256xf32>
    %57 = math.absf %56 : vector<8x256xf32>
    %cst_27 = arith.constant 0.327591091 : f32
    %58 = vector.broadcast %cst_27 : f32 to vector<8x256xf32>
    %59 = arith.mulf %58, %57 : vector<8x256xf32>
    %cst_28 = arith.constant 1.000000e+00 : f32
    %60 = vector.broadcast %cst_28 : f32 to vector<8x256xf32>
    %61 = arith.addf %60, %59 : vector<8x256xf32>
    %cst_29 = arith.constant 1.000000e+00 : f32
    %62 = vector.broadcast %cst_29 : f32 to vector<8x256xf32>
    %63 = arith.divf %62, %61 : vector<8x256xf32>
    %cst_30 = arith.constant 1.06140542 : f32
    %64 = vector.broadcast %cst_30 : f32 to vector<8x256xf32>
    %65 = arith.mulf %64, %63 : vector<8x256xf32>
    %cst_31 = arith.constant 1.45315206 : f32
    %66 = vector.broadcast %cst_31 : f32 to vector<8x256xf32>
    %67 = arith.subf %65, %66 : vector<8x256xf32>
    %68 = arith.mulf %67, %63 : vector<8x256xf32>
    %cst_32 = arith.constant 1.42141378 : f32
    %69 = vector.broadcast %cst_32 : f32 to vector<8x256xf32>
    %70 = arith.addf %68, %69 : vector<8x256xf32>
    %71 = arith.mulf %70, %63 : vector<8x256xf32>
    %cst_33 = arith.constant 0.284496725 : f32
    %72 = vector.broadcast %cst_33 : f32 to vector<8x256xf32>
    %73 = arith.subf %71, %72 : vector<8x256xf32>
    %74 = arith.mulf %73, %63 : vector<8x256xf32>
    %cst_34 = arith.constant 0.254829586 : f32
    %75 = vector.broadcast %cst_34 : f32 to vector<8x256xf32>
    %76 = arith.addf %74, %75 : vector<8x256xf32>
    %77 = arith.mulf %76, %63 : vector<8x256xf32>
    %cst_35 = arith.constant 0.000000e+00 : f32
    %78 = vector.broadcast %cst_35 : f32 to vector<8x256xf32>
    %79 = arith.subf %78, %56 : vector<8x256xf32>
    %80 = arith.mulf %79, %56 : vector<8x256xf32>
    %81 = math.exp %80 : vector<8x256xf32>
    %82 = arith.mulf %77, %81 : vector<8x256xf32>
    %cst_36 = arith.constant 1.000000e+00 : f32
    %83 = vector.broadcast %cst_36 : f32 to vector<8x256xf32>
    %84 = arith.subf %83, %82 : vector<8x256xf32>
    %cst_37 = arith.constant 0.000000e+00 : f32
    %85 = vector.broadcast %cst_37 : f32 to vector<8x256xf32>
    %86 = arith.cmpf oge, %56, %85 : vector<8x256xf32>
    %cst_38 = arith.constant 0.000000e+00 : f32
    %87 = vector.broadcast %cst_38 : f32 to vector<8x256xf32>
    %88 = arith.subf %87, %84 : vector<8x256xf32>
    %89 = arith.select %86, %84, %88 : vector<8x256xi1>, vector<8x256xf32>
    %cst_39 = arith.constant 1.000000e+00 : f32
    %90 = vector.broadcast %cst_39 : f32 to vector<8x256xf32>
    %91 = arith.addf %90, %89 : vector<8x256xf32>
    %92 = arith.mulf %54, %91 : vector<8x256xf32>
    %93 = arith.truncf %92 : vector<8x256xf32> to vector<8x256xbf16>
    %c0_40 = arith.constant 0 : index
    %c0_41 = arith.constant 0 : index
    %94 = vector.load %arg6[%c0_40, %c0_41] : memref<256x128xbf16, #tpu.memory_space<vmem>>, vector<256x128xbf16>
    %cst_42 = arith.constant dense<0.000000e+00> : vector<8x128xf32>
    %95 = tpu.matmul %93, %94, %cst_42 {dimension_numbers = #tpu.dot_dimension_numbers<[1], [0], [0], [1], [0, 0, 1, 1], [], []>} : vector<8x256xbf16>, vector<256x128xbf16>, vector<8x128xf32> -> vector<8x128xf32>
    %c0_43 = arith.constant 0 : index
    %c0_44 = arith.constant 0 : index
    %96 = vector.load %arg7[%c0_43, %c0_44] : memref<1x128xf32, #tpu.memory_space<vmem>>, vector<1x128xf32>
    %97 = vector.broadcast %96 : vector<1x128xf32> to vector<8x128xf32>
    %98 = arith.addf %95, %97 : vector<8x128xf32>
    %cst_45 = arith.constant 5.000000e-01 : f32
    %99 = vector.broadcast %cst_45 : f32 to vector<8x128xf32>
    %100 = arith.mulf %99, %98 : vector<8x128xf32>
    %cst_46 = arith.constant 0.707106769 : f32
    %101 = vector.broadcast %cst_46 : f32 to vector<8x128xf32>
    %102 = arith.mulf %98, %101 : vector<8x128xf32>
    %103 = math.absf %102 : vector<8x128xf32>
    %cst_47 = arith.constant 0.327591091 : f32
    %104 = vector.broadcast %cst_47 : f32 to vector<8x128xf32>
    %105 = arith.mulf %104, %103 : vector<8x128xf32>
    %cst_48 = arith.constant 1.000000e+00 : f32
    %106 = vector.broadcast %cst_48 : f32 to vector<8x128xf32>
    %107 = arith.addf %106, %105 : vector<8x128xf32>
    %cst_49 = arith.constant 1.000000e+00 : f32
    %108 = vector.broadcast %cst_49 : f32 to vector<8x128xf32>
    %109 = arith.divf %108, %107 : vector<8x128xf32>
    %cst_50 = arith.constant 1.06140542 : f32
    %110 = vector.broadcast %cst_50 : f32 to vector<8x128xf32>
    %111 = arith.mulf %110, %109 : vector<8x128xf32>
    %cst_51 = arith.constant 1.45315206 : f32
    %112 = vector.broadcast %cst_51 : f32 to vector<8x128xf32>
    %113 = arith.subf %111, %112 : vector<8x128xf32>
    %114 = arith.mulf %113, %109 : vector<8x128xf32>
    %cst_52 = arith.constant 1.42141378 : f32
    %115 = vector.broadcast %cst_52 : f32 to vector<8x128xf32>
    %116 = arith.addf %114, %115 : vector<8x128xf32>
    %117 = arith.mulf %116, %109 : vector<8x128xf32>
    %cst_53 = arith.constant 0.284496725 : f32
    %118 = vector.broadcast %cst_53 : f32 to vector<8x128xf32>
    %119 = arith.subf %117, %118 : vector<8x128xf32>
    %120 = arith.mulf %119, %109 : vector<8x128xf32>
    %cst_54 = arith.constant 0.254829586 : f32
    %121 = vector.broadcast %cst_54 : f32 to vector<8x128xf32>
    %122 = arith.addf %120, %121 : vector<8x128xf32>
    %123 = arith.mulf %122, %109 : vector<8x128xf32>
    %cst_55 = arith.constant 0.000000e+00 : f32
    %124 = vector.broadcast %cst_55 : f32 to vector<8x128xf32>
    %125 = arith.subf %124, %102 : vector<8x128xf32>
    %126 = arith.mulf %125, %102 : vector<8x128xf32>
    %127 = math.exp %126 : vector<8x128xf32>
    %128 = arith.mulf %123, %127 : vector<8x128xf32>
    %cst_56 = arith.constant 1.000000e+00 : f32
    %129 = vector.broadcast %cst_56 : f32 to vector<8x128xf32>
    %130 = arith.subf %129, %128 : vector<8x128xf32>
    %cst_57 = arith.constant 0.000000e+00 : f32
    %131 = vector.broadcast %cst_57 : f32 to vector<8x128xf32>
    %132 = arith.cmpf oge, %102, %131 : vector<8x128xf32>
    %cst_58 = arith.constant 0.000000e+00 : f32
    %133 = vector.broadcast %cst_58 : f32 to vector<8x128xf32>
    %134 = arith.subf %133, %130 : vector<8x128xf32>
    %135 = arith.select %132, %130, %134 : vector<8x128xi1>, vector<8x128xf32>
    %cst_59 = arith.constant 1.000000e+00 : f32
    %136 = vector.broadcast %cst_59 : f32 to vector<8x128xf32>
    %137 = arith.addf %136, %135 : vector<8x128xf32>
    %138 = arith.mulf %100, %137 : vector<8x128xf32>
    %139 = arith.truncf %138 : vector<8x128xf32> to vector<8x128xbf16>
    %c0_60 = arith.constant 0 : index
    %c0_61 = arith.constant 0 : index
    %140 = vector.load %arg8[%c0_60, %c0_61] : memref<128x128xbf16, #tpu.memory_space<vmem>>, vector<128x128xbf16>
    %cst_62 = arith.constant dense<0.000000e+00> : vector<8x128xf32>
    %141 = tpu.matmul %139, %140, %cst_62 {dimension_numbers = #tpu.dot_dimension_numbers<[1], [0], [0], [1], [0, 0, 1, 1], [], []>} : vector<8x128xbf16>, vector<128x128xbf16>, vector<8x128xf32> -> vector<8x128xf32>
    %c0_63 = arith.constant 0 : index
    %c0_64 = arith.constant 0 : index
    %142 = vector.load %arg9[%c0_63, %c0_64] : memref<1x128xf32, #tpu.memory_space<vmem>>, vector<1x128xf32>
    %143 = vector.broadcast %142 : vector<1x128xf32> to vector<8x128xf32>
    %144 = arith.addf %141, %143 : vector<8x128xf32>
    %cst_65 = arith.constant 5.000000e-01 : f32
    %145 = vector.broadcast %cst_65 : f32 to vector<8x128xf32>
    %146 = arith.mulf %145, %144 : vector<8x128xf32>
    %147 = math.tanh %146 : vector<8x128xf32>
    %cst_66 = arith.constant 1.000000e+00 : f32
    %148 = vector.broadcast %cst_66 : f32 to vector<8x128xf32>
    %149 = arith.addf %147, %148 : vector<8x128xf32>
    %cst_67 = arith.constant 5.000000e-01 : f32
    %150 = vector.broadcast %cst_67 : f32 to vector<8x128xf32>
    %151 = arith.mulf %150, %149 : vector<8x128xf32>
    %c0_68 = arith.constant 0 : index
    %c0_69 = arith.constant 0 : index
    %152 = vector.load %arg10[%c0_68, %c0_69] : memref<8x128xf32, #tpu.memory_space<vmem>>, vector<8x128xf32>
    tpu.vector_store %arg10[%c0_68, %c0_69], %151 {strides = array<i32>} : memref<8x128xf32, #tpu.memory_space<vmem>>, vector<8x128xf32>,
    return
  }
  func.func @transform_0(%arg0: i32) -> (i32, i32) {
    %c0_i32 = arith.constant 0 : i32
    %c0_i32_0 = arith.constant 0 : i32
    return %arg0, %c0_i32 : i32, i32
  }
  func.func @transform_1(%arg0: i32) -> (i32, i32) {
    %c0_i32 = arith.constant 0 : i32
    %c0_i32_0 = arith.constant 0 : i32
    %c0_i32_1 = arith.constant 0 : i32
    return %c0_i32, %c0_i32_0 : i32, i32
  }
  func.func @transform_2(%arg0: i32) -> (i32, i32) {
    %c0_i32 = arith.constant 0 : i32
    %c0_i32_0 = arith.constant 0 : i32
    %c0_i32_1 = arith.constant 0 : i32
    return %c0_i32, %c0_i32_0 : i32, i32
  }
  func.func @transform_3(%arg0: i32) -> (i32, i32) {
    %c0_i32 = arith.constant 0 : i32
    %c0_i32_0 = arith.constant 0 : i32
    %c0_i32_1 = arith.constant 0 : i32
    return %c0_i32, %c0_i32_0 : i32, i32
  }
  func.func @transform_4(%arg0: i32) -> (i32, i32) {
    %c0_i32 = arith.constant 0 : i32
    %c0_i32_0 = arith.constant 0 : i32
    %c0_i32_1 = arith.constant 0 : i32
    return %c0_i32, %c0_i32_0 : i32, i32
  }
  func.func @transform_5(%arg0: i32) -> (i32, i32) {
    %c0_i32 = arith.constant 0 : i32
    %c0_i32_0 = arith.constant 0 : i32
    %c0_i32_1 = arith.constant 0 : i32
    return %c0_i32, %c0_i32_0 : i32, i32
  }
  func.func @transform_6(%arg0: i32) -> (i32, i32) {
    %c0_i32 = arith.constant 0 : i32
    %c0_i32_0 = arith.constant 0 : i32
    %c0_i32_1 = arith.constant 0 : i32
    return %c0_i32, %c0_i32_0 : i32, i32
  }
  func.func @transform_7(%arg0: i32) -> (i32, i32) {
    %c0_i32 = arith.constant 0 : i32
    %c0_i32_0 = arith.constant 0 : i32
    %c0_i32_1 = arith.constant 0 : i32
    return %c0_i32, %c0_i32_0 : i32, i32
  }
  func.func @transform_8(%arg0: i32) -> (i32, i32) {
    %c0_i32 = arith.constant 0 : i32
    %c0_i32_0 = arith.constant 0 : i32
    %c0_i32_1 = arith.constant 0 : i32
    return %c0_i32, %c0_i32_0 : i32, i32
  }
  func.func @transform_9(%arg0: i32) -> (i32, i32) {
    %c0_i32 = arith.constant 0 : i32
    %c0_i32_0 = arith.constant 0 : i32
    return %arg0, %c0_i32 : i32, i32
  }
}

</mosaic_0001>

<llo_original>
// kernel: mlp_forward.1
$region0: #{mlp_forward.1}
  #allocation0 [shape = 'u32[]', space=smem, size = 0x4, offset = 0x4, fixed_abs, tag = 'smem constant byte address 0x4 - core index']
  #allocation1 [shape = 'u32[72,128]{1,0:T(1,128)}', space=vmem, size = 0x9000, scoped, tag = 'internal scratch']
  %s0 = inlined_call_operand.vmem [shape: f32[8,128], index: 0, kind: input, shape index: {}]
  %s1 = inlined_call_operand.hbm [shape: bf16[128,512], index: 1, kind: input, shape index: {}]
  %s2 = inlined_call_operand.vmem [shape: f32[1,512], index: 2, kind: input, shape index: {}]
  %s3 = inlined_call_operand.hbm [shape: bf16[512,256], index: 3, kind: input, shape index: {}]
  %s4 = inlined_call_operand.vmem [shape: f32[1,256], index: 4, kind: input, shape index: {}]
  %s5 = inlined_call_operand.hbm [shape: bf16[256,128], index: 5, kind: input, shape index: {}]
  %s6 = inlined_call_operand.vmem [shape: f32[1,128], index: 6, kind: input, shape index: {}]
  %s7 = inlined_call_operand.hbm [shape: bf16[128,128], index: 7, kind: input, shape index: {}]
  %s8 = inlined_call_operand.vmem [shape: f32[1,128], index: 8, kind: input, shape index: {}]
  %s9 = inlined_call_operand.vmem [shape: f32[8,128], index: 9, kind: output, shape index: {}]
  %s10 = sld [smem:[#allocation0]]
  $region62: #{mlp_forward.1} parent=0
    _
  %s12 = ssub.s32 1, %s10
  %s13 = scalar_select 0, %s12, %s10
  $region1: #{mlp_forward.1} parent=0
    #allocation2 [shape = 'u8[131072]{0}', space=vmem, size = 0x20000, scoped, tag = 'input window, operand 1, single buffered']
    #allocation3 [shape = 's32[1]{0}', space=sflag, size = 0x4, scoped, tag = 'scoped memory for mlp_forward.1']
    #allocation4 [shape = 'u8[262144]{0}', space=vmem, size = 0x40000, scoped, tag = 'input window, operand 3, single buffered']
    #allocation5 [shape = 's32[1]{0}', space=sflag, size = 0x4, scoped, tag = 'scoped memory for mlp_forward.1']
    #allocation6 [shape = 'u8[65536]{0}', space=vmem, size = 0x10000, scoped, tag = 'input window, operand 5, single buffered']
    #allocation7 [shape = 'u8[32768]{0}', space=vmem, size = 0x8000, scoped, tag = 'input window, operand 7, single buffered']
    #allocation8 [shape = 's32[1]{0}', space=sflag, size = 0x4, scoped, tag = 'scoped memory for mlp_forward.1']
    %14 = vsyncpa [#allocation3], 0
    %15 = vsyncpa [#allocation5], 0
    %16 = vsyncpa [#allocation8], 0
    // Predicated region
    $region2: #{mlp_forward.1} parent=1 // pred_check
      _
    $region3: #{mlp_forward.1} parent=1 // pred_check_branch
      %18 = sbr.rel (0) target = $region5
    $region4: #{mlp_forward.1} parent=1 // pred_region
      _
    $region5: #{mlp_forward.1} parent=1 // pred_fallthru
      _
    // Predicated region
    $region6: #{mlp_forward.1} parent=1 // pred_check
      _
    $region7: #{mlp_forward.1} parent=1 // pred_check_branch
      %20 = sbr.rel (0) target = $region9
    $region8: #{mlp_forward.1} parent=1 // pred_region
      %22 = vsyncadd [#allocation3], 0
      %s23 = sshll.u32 %s1, 4
      %s24 = int_to_ptr.hbm [resolvable:$true] %s23
      %s25 = sshll.u32 [#allocation2], 4
      %s26 = int_to_ptr.vmem [resolvable:$true] %s25
      %31 = dma.hbm_to_vmem [thread:$0]  %s24, 4096, %s26, [#allocation3], 256, 256, 16
    $region9: #{mlp_forward.1} parent=1 // pred_fallthru
      _
    // Predicated region
    $region10: #{mlp_forward.1} parent=1 // pred_check
      _
    $region11: #{mlp_forward.1} parent=1 // pred_check_branch
      %33 = sbr.rel (0) target = $region13
    $region12: #{mlp_forward.1} parent=1 // pred_region
      _
    $region13: #{mlp_forward.1} parent=1 // pred_fallthru
      _
    // Predicated region
    $region14: #{mlp_forward.1} parent=1 // pred_check
      _
    $region15: #{mlp_forward.1} parent=1 // pred_check_branch
      %35 = sbr.rel (0) target = $region17
    $region16: #{mlp_forward.1} parent=1 // pred_region
      %37 = vsyncadd [#allocation5], 0
      %s38 = sshll.u32 %s3, 4
      %s39 = int_to_ptr.hbm [resolvable:$true] %s38
      %s40 = sshll.u32 [#allocation4], 4
      %s41 = int_to_ptr.vmem [resolvable:$true] %s40
      %46 = dma.hbm_to_vmem [thread:$0]  %s39, 8192, %s41, [#allocation5], 128, 128, 8
    $region17: #{mlp_forward.1} parent=1 // pred_fallthru
      _
    // Predicated region
    $region18: #{mlp_forward.1} parent=1 // pred_check
      _
    $region19: #{mlp_forward.1} parent=1 // pred_check_branch
      %48 = sbr.rel (0) target = $region21
    $region20: #{mlp_forward.1} parent=1 // pred_region
      _
    $region21: #{mlp_forward.1} parent=1 // pred_fallthru
      _
    // Predicated region
    $region22: #{mlp_forward.1} parent=1 // pred_check
      _
    $region23: #{mlp_forward.1} parent=1 // pred_check_branch
      %50 = sbr.rel (0) target = $region25
    $region24: #{mlp_forward.1} parent=1 // pred_region
      %52 = vsyncadd [#allocation5], 0
      %s53 = sshll.u32 %s5, 4
      %s54 = int_to_ptr.hbm [resolvable:$true] %s53
      %s55 = sshll.u32 [#allocation6], 4
      %s56 = int_to_ptr.vmem [resolvable:$true] %s55
      %61 = dma.hbm_to_vmem [thread:$0]  %s54, 2048, %s56, [#allocation5], 64, 64, 4
    $region25: #{mlp_forward.1} parent=1 // pred_fallthru
      _
    // Predicated region
    $region26: #{mlp_forward.1} parent=1 // pred_check
      _
    $region27: #{mlp_forward.1} parent=1 // pred_check_branch
      %63 = sbr.rel (0) target = $region29
    $region28: #{mlp_forward.1} parent=1 // pred_region
      _
    $region29: #{mlp_forward.1} parent=1 // pred_fallthru
      _
    // Predicated region
    $region30: #{mlp_forward.1} parent=1 // pred_check
      _
    $region31: #{mlp_forward.1} parent=1 // pred_check_branch
      %65 = sbr.rel (0) target = $region33
    $region32: #{mlp_forward.1} parent=1 // pred_region
      %67 = vsyncadd [#allocation8], 0
      %s68 = sshll.u32 %s7, 4
      %s69 = int_to_ptr.hbm [resolvable:$true] %s68
      %s70 = sshll.u32 [#allocation7], 4
      %s71 = int_to_ptr.vmem [resolvable:$true] %s70
      %76 = dma.hbm_to_vmem [thread:$0]  %s69, 1024, %s71, [#allocation8], 64, 64, 4
    $region33: #{mlp_forward.1} parent=1 // pred_fallthru
      _
    // Predicated region
    $region34: #{mlp_forward.1} parent=1 // pred_check
      _
    $region35: #{mlp_forward.1} parent=1 // pred_check_branch
      %78 = sbr.rel (0) target = $region37
    $region36: #{mlp_forward.1} parent=1 // pred_region
      _
    $region37: #{mlp_forward.1} parent=1 // pred_fallthru
      _
    // Predicated region
    $region38: #{mlp_forward.1} parent=1 // pred_check
      _
    $region39: #{mlp_forward.1} parent=1 // pred_check_branch
      %80 = sbr.rel (0) target = $region41
    $region40: #{mlp_forward.1} parent=1 // pred_region
      %82 = dma.done [#allocation3], 4096
    $region41: #{mlp_forward.1} parent=1 // pred_fallthru
      _
    // Predicated region
    $region42: #{mlp_forward.1} parent=1 // pred_check
      _
    $region43: #{mlp_forward.1} parent=1 // pred_check_branch
      %84 = sbr.rel (0) target = $region45
    $region44: #{mlp_forward.1} parent=1 // pred_region
      %86 = dma.done [#allocation5], 8192
    $region45: #{mlp_forward.1} parent=1 // pred_fallthru
      _
    // Predicated region
    $region46: #{mlp_forward.1} parent=1 // pred_check
      _
    $region47: #{mlp_forward.1} parent=1 // pred_check_branch
      %88 = sbr.rel (0) target = $region49
    $region48: #{mlp_forward.1} parent=1 // pred_region
      %90 = dma.done [#allocation5], 2048
    $region49: #{mlp_forward.1} parent=1 // pred_fallthru
      _
    // Predicated region
    $region50: #{mlp_forward.1} parent=1 // pred_check
      _
    $region51: #{mlp_forward.1} parent=1 // pred_check_branch
      %92 = sbr.rel (0) target = $region53
    $region52: #{mlp_forward.1} parent=1 // pred_region
      %94 = dma.done [#allocation8], 1024
    $region53: #{mlp_forward.1} parent=1 // pred_fallthru
      _
    %v95 = vld [vmem:[%s0] sm:$0xff]
    %v96 = vpack.c.bf16 %v95, %v95
    %v97 = vld [vmem:[#allocation2] sm:$0xff]
    %v98 = vld [vmem:[#allocation2 + $0x8] sm:$0xff]
    %v99 = vld [vmem:[#allocation2 + $0x10] sm:$0xff]
    %v100 = vld [vmem:[#allocation2 + $0x18] sm:$0xff]
    %v101 = vld [vmem:[#allocation2 + $0x20] sm:$0xff]
    %v102 = vld [vmem:[#allocation2 + $0x28] sm:$0xff]
    %v103 = vld [vmem:[#allocation2 + $0x30] sm:$0xff]
    %v104 = vld [vmem:[#allocation2 + $0x38] sm:$0xff]
    %v105 = vld [vmem:[#allocation2 + $0x40] sm:$0xff]
    %v106 = vld [vmem:[#allocation2 + $0x48] sm:$0xff]
    %v107 = vld [vmem:[#allocation2 + $0x50] sm:$0xff]
    %v108 = vld [vmem:[#allocation2 + $0x58] sm:$0xff]
    %v109 = vld [vmem:[#allocation2 + $0x60] sm:$0xff]
    %v110 = vld [vmem:[#allocation2 + $0x68] sm:$0xff]
    %v111 = vld [vmem:[#allocation2 + $0x70] sm:$0xff]
    %v112 = vld [vmem:[#allocation2 + $0x78] sm:$0xff]
    %v113 = vld [vmem:[#allocation2 + $0x80] sm:$0xff]
    %v114 = vld [vmem:[#allocation2 + $0x88] sm:$0xff]
    %v115 = vld [vmem:[#allocation2 + $0x90] sm:$0xff]
    %v116 = vld [vmem:[#allocation2 + $0x98] sm:$0xff]
    %v117 = vld [vmem:[#allocation2 + $0xa0] sm:$0xff]
    %v118 = vld [vmem:[#allocation2 + $0xa8] sm:$0xff]
    %v119 = vld [vmem:[#allocation2 + $0xb0] sm:$0xff]
    %v120 = vld [vmem:[#allocation2 + $0xb8] sm:$0xff]
    %v121 = vld [vmem:[#allocation2 + $0xc0] sm:$0xff]
    %v122 = vld [vmem:[#allocation2 + $0xc8] sm:$0xff]
    %v123 = vld [vmem:[#allocation2 + $0xd0] sm:$0xff]
    %v124 = vld [vmem:[#allocation2 + $0xd8] sm:$0xff]
    %v125 = vld [vmem:[#allocation2 + $0xe0] sm:$0xff]
    %v126 = vld [vmem:[#allocation2 + $0xe8] sm:$0xff]
    %v127 = vld [vmem:[#allocation2 + $0xf0] sm:$0xff]
    %v128 = vld [vmem:[#allocation2 + $0xf8] sm:$0xff]
    %v129 = vld [vmem:[%s2] sm:$0xf]
    %v131 = vperm.slane %v129, 0
    %v132 = vperm.slane %v129, 1
    %v133 = vperm.slane %v129, 2
    %v134 = vperm.slane %v129, 3
    %v171 = vunpack.c.l.b16 %v97
    %v172 = vunpack.c.h.b16 %v97
    %v173 = vunpack.c.l.b16 %v98
    %v174 = vunpack.c.h.b16 %v98
    %v175 = vunpack.c.l.b16 %v99
    %v176 = vunpack.c.h.b16 %v99
    %v177 = vunpack.c.l.b16 %v100
    %v178 = vunpack.c.h.b16 %v100
    %v179 = vunpack.c.l.b16 %v101
    %v180 = vunpack.c.h.b16 %v101
    %v181 = vunpack.c.l.b16 %v102
    %v182 = vunpack.c.h.b16 %v102
    %v183 = vunpack.c.l.b16 %v103
    %v184 = vunpack.c.h.b16 %v103
    %v185 = vunpack.c.l.b16 %v104
    %v186 = vunpack.c.h.b16 %v104
    %v187 = vunpack.c.l.b16 %v105
    %v188 = vunpack.c.h.b16 %v105
    %v189 = vunpack.c.l.b16 %v106
    %v190 = vunpack.c.h.b16 %v106
    %v191 = vunpack.c.l.b16 %v107
    %v192 = vunpack.c.h.b16 %v107
    %v193 = vunpack.c.l.b16 %v108
    %v194 = vunpack.c.h.b16 %v108
    %v195 = vunpack.c.l.b16 %v109
    %v196 = vunpack.c.h.b16 %v109
    %v197 = vunpack.c.l.b16 %v110
    %v198 = vunpack.c.h.b16 %v110
    %v199 = vunpack.c.l.b16 %v111
    %v200 = vunpack.c.h.b16 %v111
    %v201 = vunpack.c.l.b16 %v112
    %v202 = vunpack.c.h.b16 %v112
    %v203 = vunpack.c.l.b16 %v113
    %v204 = vunpack.c.h.b16 %v113
    %v205 = vunpack.c.l.b16 %v114
    %v206 = vunpack.c.h.b16 %v114
    %v207 = vunpack.c.l.b16 %v115
    %v208 = vunpack.c.h.b16 %v115
    %v209 = vunpack.c.l.b16 %v116
    %v210 = vunpack.c.h.b16 %v116
    %v211 = vunpack.c.l.b16 %v117
    %v212 = vunpack.c.h.b16 %v117
    %v213 = vunpack.c.l.b16 %v118
    %v214 = vunpack.c.h.b16 %v118
    %v215 = vunpack.c.l.b16 %v119
    %v216 = vunpack.c.h.b16 %v119
    %v217 = vunpack.c.l.b16 %v120
    %v218 = vunpack.c.h.b16 %v120
    %v219 = vunpack.c.l.b16 %v121
    %v220 = vunpack.c.h.b16 %v121
    %v221 = vunpack.c.l.b16 %v122
    %v222 = vunpack.c.h.b16 %v122
    %v223 = vunpack.c.l.b16 %v123
    %v224 = vunpack.c.h.b16 %v123
    %v225 = vunpack.c.l.b16 %v124
    %v226 = vunpack.c.h.b16 %v124
    %v227 = vunpack.c.l.b16 %v125
    %v228 = vunpack.c.h.b16 %v125
    %v229 = vunpack.c.l.b16 %v126
    %v230 = vunpack.c.h.b16 %v126
    %v231 = vunpack.c.l.b16 %v127
    %v232 = vunpack.c.h.b16 %v127
    %v233 = vunpack.c.l.b16 %v128
    %v234 = vunpack.c.h.b16 %v128
    %v235 = vpack.c.b16 %v175, %v171
    %v236 = vpack.c.b16 %v176, %v172
    %v237 = vpack.c.b16 %v177, %v173
    %v238 = vpack.c.b16 %v178, %v174
    %v239 = vpack.c.b16 %v183, %v179
    %v240 = vpack.c.b16 %v184, %v180
    %v241 = vpack.c.b16 %v185, %v181
    %v242 = vpack.c.b16 %v186, %v182
    %v243 = vpack.c.b16 %v191, %v187
    %v244 = vpack.c.b16 %v192, %v188
    %v245 = vpack.c.b16 %v193, %v189
    %v246 = vpack.c.b16 %v194, %v190
    %v247 = vpack.c.b16 %v199, %v195
    %v248 = vpack.c.b16 %v200, %v196
    %v249 = vpack.c.b16 %v201, %v197
    %v250 = vpack.c.b16 %v202, %v198
    %v251 = vpack.c.b16 %v207, %v203
    %v252 = vpack.c.b16 %v208, %v204
    %v253 = vpack.c.b16 %v209, %v205
    %v254 = vpack.c.b16 %v210, %v206
    %v255 = vpack.c.b16 %v215, %v211
    %v256 = vpack.c.b16 %v216, %v212
    %v257 = vpack.c.b16 %v217, %v213
    %v258 = vpack.c.b16 %v218, %v214
    %v259 = vpack.c.b16 %v223, %v219
    %v260 = vpack.c.b16 %v224, %v220
    %v261 = vpack.c.b16 %v225, %v221
    %v262 = vpack.c.b16 %v226, %v222
    %v263 = vpack.c.b16 %v231, %v227
    %v264 = vpack.c.b16 %v232, %v228
    %v265 = vpack.c.b16 %v233, %v229
    %v266 = vpack.c.b16 %v234, %v230
    %299 = vmatpush.bf16.msra.mxu0 %v263
    %300 = vmatpush.bf16.msra.mxu0 %v259
    %301 = vmatpush.bf16.msra.mxu0 %v255
    %302 = vmatpush.bf16.msra.mxu0 %v251
    %303 = vmatpush.bf16.msra.mxu0 %v247
    %304 = vmatpush.bf16.msra.mxu0 %v243
    %305 = vmatpush.bf16.msra.mxu0 %v239
    %306 = vmatpush.bf16.msra.mxu0 %v235
    %307 = vmatmul.bf16.gmra.mxu0 %v96
    %v308 = vpop.f32.mrf.mxu0
    %v309 = vadd.f32 %v131, %v308
    %v310 = vpop.f32.mrf.mxu0
    %311 = vdwg.mxu0
    %312 = vmatpush.bf16.msra.mxu0 %v264
    %313 = vmatpush.bf16.msra.mxu0 %v260
    %314 = vmatpush.bf16.msra.mxu0 %v256
    %315 = vmatpush.bf16.msra.mxu0 %v252
    %316 = vmatpush.bf16.msra.mxu0 %v248
    %317 = vmatpush.bf16.msra.mxu0 %v244
    %318 = vmatpush.bf16.msra.mxu0 %v240
    %319 = vmatpush.bf16.msra.mxu0 %v236
    %320 = vmatmul.bf16.gmra.mxu0 %v96
    %v321 = vpop.f32.mrf.mxu0
    %v322 = vadd.f32 %v132, %v321
    %v323 = vpop.f32.mrf.mxu0
    %324 = vdwg.mxu0
    %325 = vmatpush.bf16.msra.mxu0 %v265
    %326 = vmatpush.bf16.msra.mxu0 %v261
    %327 = vmatpush.bf16.msra.mxu0 %v257
    %328 = vmatpush.bf16.msra.mxu0 %v253
    %329 = vmatpush.bf16.msra.mxu0 %v249
    %330 = vmatpush.bf16.msra.mxu0 %v245
    %331 = vmatpush.bf16.msra.mxu0 %v241
    %332 = vmatpush.bf16.msra.mxu0 %v237
    %333 = vmatmul.bf16.gmra.mxu0 %v96
    %v334 = vpop.f32.mrf.mxu0
    %v335 = vadd.f32 %v133, %v334
    %v336 = vpop.f32.mrf.mxu0
    %337 = vdwg.mxu0
    %338 = vmatpush.bf16.msra.mxu0 %v266
    %339 = vmatpush.bf16.msra.mxu0 %v262
    %340 = vmatpush.bf16.msra.mxu0 %v258
    %341 = vmatpush.bf16.msra.mxu0 %v254
    %342 = vmatpush.bf16.msra.mxu0 %v250
    %343 = vmatpush.bf16.msra.mxu0 %v246
    %344 = vmatpush.bf16.msra.mxu0 %v242
    %345 = vmatpush.bf16.msra.mxu0 %v238
    %346 = vmatmul.bf16.gmra.mxu0 %v96
    %v347 = vpop.f32.mrf.mxu0
    %v348 = vadd.f32 %v134, %v347
    %v349 = vpop.f32.mrf.mxu0
    %350 = vdwg.mxu0
    %v351 = vmul.f32 %v309, 0.5
    %v352 = vmul.f32 %v322, 0.5
    %v353 = vmul.f32 %v335, 0.5
    %v354 = vmul.f32 %v348, 0.5
    %v355 = vmul.f32 %v309, 0.70710677
    %v356 = vmul.f32 %v322, 0.70710677
    %v357 = vmul.f32 %v335, 0.70710677
    %v358 = vmul.f32 %v348, 0.70710677
    %v359 = vand.u32 2147483647, %v355
    %v360 = vand.u32 2147483647, %v356
    %v361 = vand.u32 2147483647, %v357
    %v362 = vand.u32 2147483647, %v358
    %v363 = vmul.f32 %v359, 0.3275911
    %v364 = vmul.f32 %v360, 0.3275911
    %v365 = vmul.f32 %v361, 0.3275911
    %v366 = vmul.f32 %v362, 0.3275911
    %v367 = vadd.f32 %v363, 1.0
    %v368 = vadd.f32 %v364, 1.0
    %v369 = vadd.f32 %v365, 1.0
    %v370 = vadd.f32 %v366, 1.0
    %v371 = vrcp.pop %v367
    %v372 = vmul.f32 %v367, %v371
    %v373 = vsub.f32 1.0, %v372
    %v374 = vmul.f32 %v371, %v373
    %v375 = vadd.f32 %v371, %v374
    %vm376 = vweird.f32 %v367
    %vm377 = vweird.f32 %v371
    %vm378 = vmor %vm376, %vm377
    %v379 = vsel %vm378, %v371, %v375
    %v380 = vand.u32 2147483647, %v367
    %vm381 = vcmp.eq.f32.partialorder %v380, 8.507059e+37
    %v382 = vand.u32 %v367, 2147483648
    %v383 = vor.u32 1.1754944e-38, %v382
    %v384 = vsel %vm381, %v383, %v379
    %v385 = vmul.f32 1.0, %v384
    %v386 = vrcp.pop %v368
    %v387 = vmul.f32 %v368, %v386
    %v388 = vsub.f32 1.0, %v387
    %v389 = vmul.f32 %v386, %v388
    %v390 = vadd.f32 %v386, %v389
    %vm391 = vweird.f32 %v368
    %vm392 = vweird.f32 %v386
    %vm393 = vmor %vm391, %vm392
    %v394 = vsel %vm393, %v386, %v390
    %v395 = vand.u32 2147483647, %v368
    %vm396 = vcmp.eq.f32.partialorder %v395, 8.507059e+37
    %v397 = vand.u32 %v368, 2147483648
    %v398 = vor.u32 1.1754944e-38, %v397
    %v399 = vsel %vm396, %v398, %v394
    %v400 = vmul.f32 1.0, %v399
    %v401 = vrcp.pop %v369
    %v402 = vmul.f32 %v369, %v401
    %v403 = vsub.f32 1.0, %v402
    %v404 = vmul.f32 %v401, %v403
    %v405 = vadd.f32 %v401, %v404
    %vm406 = vweird.f32 %v369
    %vm407 = vweird.f32 %v401
    %vm408 = vmor %vm406, %vm407
    %v409 = vsel %vm408, %v401, %v405
    %v410 = vand.u32 2147483647, %v369
    %vm411 = vcmp.eq.f32.partialorder %v410, 8.507059e+37
    %v412 = vand.u32 %v369, 2147483648
    %v413 = vor.u32 1.1754944e-38, %v412
    %v414 = vsel %vm411, %v413, %v409
    %v415 = vmul.f32 1.0, %v414
    %v416 = vrcp.pop %v370
    %v417 = vmul.f32 %v370, %v416
    %v418 = vsub.f32 1.0, %v417
    %v419 = vmul.f32 %v416, %v418
    %v420 = vadd.f32 %v416, %v419
    %vm421 = vweird.f32 %v370
    %vm422 = vweird.f32 %v416
    %vm423 = vmor %vm421, %vm422
    %v424 = vsel %vm423, %v416, %v420
    %v425 = vand.u32 2147483647, %v370
    %vm426 = vcmp.eq.f32.partialorder %v425, 8.507059e+37
    %v427 = vand.u32 %v370, 2147483648
    %v428 = vor.u32 1.1754944e-38, %v427
    %v429 = vsel %vm426, %v428, %v424
    %v430 = vmul.f32 1.0, %v429
    %v431 = vmul.f32 %v385, 1.0614054
    %v432 = vmul.f32 %v400, 1.0614054
    %v433 = vmul.f32 %v415, 1.0614054
    %v434 = vmul.f32 %v430, 1.0614054
    %v435 = vsub.f32 %v431, 1.4531521
    %v436 = vsub.f32 %v432, 1.4531521
    %v437 = vsub.f32 %v433, 1.4531521
    %v438 = vsub.f32 %v434, 1.4531521
    %v439 = vmul.f32 %v435, %v385
    %v440 = vmul.f32 %v436, %v400
    %v441 = vmul.f32 %v437, %v415
    %v442 = vmul.f32 %v438, %v430
    %v443 = vadd.f32 %v439, 1.4214138
    %v444 = vadd.f32 %v440, 1.4214138
    %v445 = vadd.f32 %v441, 1.4214138
    %v446 = vadd.f32 %v442, 1.4214138
    %v447 = vmul.f32 %v443, %v385
    %v448 = vmul.f32 %v444, %v400
    %v449 = vmul.f32 %v445, %v415
    %v450 = vmul.f32 %v446, %v430
    %v451 = vsub.f32 %v447, 0.28449672
    %v452 = vsub.f32 %v448, 0.28449672
    %v453 = vsub.f32 %v449, 0.28449672
    %v454 = vsub.f32 %v450, 0.28449672
    %v455 = vmul.f32 %v451, %v385
    %v456 = vmul.f32 %v452, %v400
    %v457 = vmul.f32 %v453, %v415
    %v458 = vmul.f32 %v454, %v430
    %v459 = vadd.f32 %v455, 0.2548296
    %v460 = vadd.f32 %v456, 0.2548296
    %v461 = vadd.f32 %v457, 0.2548296
    %v462 = vadd.f32 %v458, 0.2548296
    %v463 = vmul.f32 %v459, %v385
    %v464 = vmul.f32 %v460, %v400
    %v465 = vmul.f32 %v461, %v415
    %v466 = vmul.f32 %v462, %v430
    %v467 = vsub.f32 0.0, %v355
    %v468 = vsub.f32 0.0, %v356
    %v469 = vsub.f32 0.0, %v357
    %v470 = vsub.f32 0.0, %v358
    %v471 = vmul.f32 %v467, %v355
    %v472 = vmul.f32 %v468, %v356
    %v473 = vmul.f32 %v469, %v357
    %v474 = vmul.f32 %v470, %v358
    %v475 = vmul.f32 %v471, 1.442695
    %v476 = vpow.pop %v475
    %v477 = vmul.f32 %v472, 1.442695
    %v478 = vpow.pop %v477
    %v479 = vmul.f32 %v473, 1.442695
    %v480 = vpow.pop %v479
    %v481 = vmul.f32 %v474, 1.442695
    %v482 = vpow.pop %v481
    %v483 = vmul.f32 %v463, %v476
    %v484 = vmul.f32 %v464, %v478
    %v485 = vmul.f32 %v465, %v480
    %v486 = vmul.f32 %v466, %v482
    %v487 = vsub.f32 1.0, %v483
    %v488 = vsub.f32 1.0, %v484
    %v489 = vsub.f32 1.0, %v485
    %v490 = vsub.f32 1.0, %v486
    %vm491 = vcmp.ge.f32.partialorder %v355, 0.0
    %vm492 = vcmp.ge.f32.partialorder %v356, 0.0
    %vm493 = vcmp.ge.f32.partialorder %v357, 0.0
    %vm494 = vcmp.ge.f32.partialorder %v358, 0.0
    %v495 = vsub.f32 0.0, %v487
    %v496 = vsub.f32 0.0, %v488
    %v497 = vsub.f32 0.0, %v489
    %v498 = vsub.f32 0.0, %v490
    %v499 = vsel %vm491, %v487, %v495
    %v500 = vsel %vm492, %v488, %v496
    %v501 = vsel %vm493, %v489, %v497
    %v502 = vsel %vm494, %v490, %v498
    %v503 = vadd.f32 %v499, 1.0
    %v504 = vadd.f32 %v500, 1.0
    %v505 = vadd.f32 %v501, 1.0
    %v506 = vadd.f32 %v502, 1.0
    %v507 = vmul.f32 %v351, %v503
    %v508 = vmul.f32 %v352, %v504
    %v509 = vmul.f32 %v353, %v505
    %v510 = vmul.f32 %v354, %v506
    %v511 = vpack.c.bf16 %v507, %v507
    %v512 = vpack.c.bf16 %v508, %v508
    %v513 = vpack.c.bf16 %v509, %v509
    %v514 = vpack.c.bf16 %v510, %v510
    %v515 = vld [vmem:[#allocation4] sm:$0xff]
    %v516 = vld [vmem:[#allocation4 + $0x8] sm:$0xff]
    %v517 = vld [vmem:[#allocation4 + $0x10] sm:$0xff]
    %v518 = vld [vmem:[#allocation4 + $0x18] sm:$0xff]
    %v519 = vld [vmem:[#allocation4 + $0x20] sm:$0xff]
    %v520 = vld [vmem:[#allocation4 + $0x28] sm:$0xff]
    %v521 = vld [vmem:[#allocation4 + $0x30] sm:$0xff]
    %v522 = vld [vmem:[#allocation4 + $0x38] sm:$0xff]
    %v523 = vld [vmem:[#allocation4 + $0x40] sm:$0xff]
    %v524 = vld [vmem:[#allocation4 + $0x48] sm:$0xff]
    %v525 = vld [vmem:[#allocation4 + $0x50] sm:$0xff]
    %v526 = vld [vmem:[#allocation4 + $0x58] sm:$0xff]
    %v527 = vld [vmem:[#allocation4 + $0x60] sm:$0xff]
    %v528 = vld [vmem:[#allocation4 + $0x68] sm:$0xff]
    %v529 = vld [vmem:[#allocation4 + $0x70] sm:$0xff]
    %v530 = vld [vmem:[#allocation4 + $0x78] sm:$0xff]
    %v531 = vld [vmem:[#allocation4 + $0x80] sm:$0xff]
    %v532 = vld [vmem:[#allocation4 + $0x88] sm:$0xff]
    %v533 = vld [vmem:[#allocation4 + $0x90] sm:$0xff]
    %v534 = vld [vmem:[#allocation4 + $0x98] sm:$0xff]
    %v535 = vld [vmem:[#allocation4 + $0xa0] sm:$0xff]
    %v536 = vld [vmem:[#allocation4 + $0xa8] sm:$0xff]
    %v537 = vld [vmem:[#allocation4 + $0xb0] sm:$0xff]
    %v538 = vld [vmem:[#allocation4 + $0xb8] sm:$0xff]
    %v539 = vld [vmem:[#allocation4 + $0xc0] sm:$0xff]
    %v540 = vld [vmem:[#allocation4 + $0xc8] sm:$0xff]
    %v541 = vld [vmem:[#allocation4 + $0xd0] sm:$0xff]
    %v542 = vld [vmem:[#allocation4 + $0xd8] sm:$0xff]
    %v543 = vld [vmem:[#allocation4 + $0xe0] sm:$0xff]
    %v544 = vld [vmem:[#allocation4 + $0xe8] sm:$0xff]
    %v545 = vld [vmem:[#allocation4 + $0xf0] sm:$0xff]
    %v546 = vld [vmem:[#allocation4 + $0xf8] sm:$0xff]
    %v547 = vld [vmem:[#allocation4 + $0x100] sm:$0xff]
    %v548 = vld [vmem:[#allocation4 + $0x108] sm:$0xff]
    %v549 = vld [vmem:[#allocation4 + $0x110] sm:$0xff]
    %v550 = vld [vmem:[#allocation4 + $0x118] sm:$0xff]
    %v551 = vld [vmem:[#allocation4 + $0x120] sm:$0xff]
    %v552 = vld [vmem:[#allocation4 + $0x128] sm:$0xff]
    %v553 = vld [vmem:[#allocation4 + $0x130] sm:$0xff]
    %v554 = vld [vmem:[#allocation4 + $0x138] sm:$0xff]
    %v555 = vld [vmem:[#allocation4 + $0x140] sm:$0xff]
    %v556 = vld [vmem:[#allocation4 + $0x148] sm:$0xff]
    %v557 = vld [vmem:[#allocation4 + $0x150] sm:$0xff]
    %v558 = vld [vmem:[#allocation4 + $0x158] sm:$0xff]
    %v559 = vld [vmem:[#allocation4 + $0x160] sm:$0xff]
    %v560 = vld [vmem:[#allocation4 + $0x168] sm:$0xff]
    %v561 = vld [vmem:[#allocation4 + $0x170] sm:$0xff]
    %v562 = vld [vmem:[#allocation4 + $0x178] sm:$0xff]
    %v563 = vld [vmem:[#allocation4 + $0x180] sm:$0xff]
    %v564 = vld [vmem:[#allocation4 + $0x188] sm:$0xff]
    %v565 = vld [vmem:[#allocation4 + $0x190] sm:$0xff]
    %v566 = vld [vmem:[#allocation4 + $0x198] sm:$0xff]
    %v567 = vld [vmem:[#allocation4 + $0x1a0] sm:$0xff]
    %v568 = vld [vmem:[#allocation4 + $0x1a8] sm:$0xff]
    %v569 = vld [vmem:[#allocation4 + $0x1b0] sm:$0xff]
    %v570 = vld [vmem:[#allocation4 + $0x1b8] sm:$0xff]
    %v571 = vld [vmem:[#allocation4 + $0x1c0] sm:$0xff]
    %v572 = vld [vmem:[#allocation4 + $0x1c8] sm:$0xff]
    %v573 = vld [vmem:[#allocation4 + $0x1d0] sm:$0xff]
    %v574 = vld [vmem:[#allocation4 + $0x1d8] sm:$0xff]
    %v575 = vld [vmem:[#allocation4 + $0x1e0] sm:$0xff]
    %v576 = vld [vmem:[#allocation4 + $0x1e8] sm:$0xff]
    %v577 = vld [vmem:[#allocation4 + $0x1f0] sm:$0xff]
    %v578 = vld [vmem:[#allocation4 + $0x1f8] sm:$0xff]
    %v579 = vld [vmem:[%s4] sm:$0x3]
    %v581 = vperm.slane %v579, 0
    %v582 = vperm.slane %v579, 1
    %v649 = vunpack.c.l.b16 %v515
    %v650 = vunpack.c.h.b16 %v515
    %v651 = vunpack.c.l.b16 %v516
    %v652 = vunpack.c.h.b16 %v516
    %v653 = vunpack.c.l.b16 %v517
    %v654 = vunpack.c.h.b16 %v517
    %v655 = vunpack.c.l.b16 %v518
    %v656 = vunpack.c.h.b16 %v518
    %v657 = vunpack.c.l.b16 %v519
    %v658 = vunpack.c.h.b16 %v519
    %v659 = vunpack.c.l.b16 %v520
    %v660 = vunpack.c.h.b16 %v520
    %v661 = vunpack.c.l.b16 %v521
    %v662 = vunpack.c.h.b16 %v521
    %v663 = vunpack.c.l.b16 %v522
    %v664 = vunpack.c.h.b16 %v522
    %v665 = vunpack.c.l.b16 %v523
    %v666 = vunpack.c.h.b16 %v523
    %v667 = vunpack.c.l.b16 %v524
    %v668 = vunpack.c.h.b16 %v524
    %v669 = vunpack.c.l.b16 %v525
    %v670 = vunpack.c.h.b16 %v525
    %v671 = vunpack.c.l.b16 %v526
    %v672 = vunpack.c.h.b16 %v526
    %v673 = vunpack.c.l.b16 %v527
    %v674 = vunpack.c.h.b16 %v527
    %v675 = vunpack.c.l.b16 %v528
    %v676 = vunpack.c.h.b16 %v528
    %v677 = vunpack.c.l.b16 %v529
    %v678 = vunpack.c.h.b16 %v529
    %v679 = vunpack.c.l.b16 %v530
    %v680 = vunpack.c.h.b16 %v530
    %v681 = vunpack.c.l.b16 %v531
    %v682 = vunpack.c.h.b16 %v531
    %v683 = vunpack.c.l.b16 %v532
    %v684 = vunpack.c.h.b16 %v532
    %v685 = vunpack.c.l.b16 %v533
    %v686 = vunpack.c.h.b16 %v533
    %v687 = vunpack.c.l.b16 %v534
    %v688 = vunpack.c.h.b16 %v534
    %v689 = vunpack.c.l.b16 %v535
    %v690 = vunpack.c.h.b16 %v535
    %v691 = vunpack.c.l.b16 %v536
    %v692 = vunpack.c.h.b16 %v536
    %v693 = vunpack.c.l.b16 %v537
    %v694 = vunpack.c.h.b16 %v537
    %v695 = vunpack.c.l.b16 %v538
    %v696 = vunpack.c.h.b16 %v538
    %v697 = vunpack.c.l.b16 %v539
    %v698 = vunpack.c.h.b16 %v539
    %v699 = vunpack.c.l.b16 %v540
    %v700 = vunpack.c.h.b16 %v540
    %v701 = vunpack.c.l.b16 %v541
    %v702 = vunpack.c.h.b16 %v541
    %v703 = vunpack.c.l.b16 %v542
    %v704 = vunpack.c.h.b16 %v542
    %v705 = vunpack.c.l.b16 %v543
    %v706 = vunpack.c.h.b16 %v543
    %v707 = vunpack.c.l.b16 %v544
    %v708 = vunpack.c.h.b16 %v544
    %v709 = vunpack.c.l.b16 %v545
    %v710 = vunpack.c.h.b16 %v545
    %v711 = vunpack.c.l.b16 %v546
    %v712 = vunpack.c.h.b16 %v546
    %v713 = vunpack.c.l.b16 %v547
    %v714 = vunpack.c.h.b16 %v547
    %v715 = vunpack.c.l.b16 %v548
    %v716 = vunpack.c.h.b16 %v548
    %v717 = vunpack.c.l.b16 %v549
    %v718 = vunpack.c.h.b16 %v549
    %v719 = vunpack.c.l.b16 %v550
    %v720 = vunpack.c.h.b16 %v550
    %v721 = vunpack.c.l.b16 %v551
    %v722 = vunpack.c.h.b16 %v551
    %v723 = vunpack.c.l.b16 %v552
    %v724 = vunpack.c.h.b16 %v552
    %v725 = vunpack.c.l.b16 %v553
    %v726 = vunpack.c.h.b16 %v553
    %v727 = vunpack.c.l.b16 %v554
    %v728 = vunpack.c.h.b16 %v554
    %v729 = vunpack.c.l.b16 %v555
    %v730 = vunpack.c.h.b16 %v555
    %v731 = vunpack.c.l.b16 %v556
    %v732 = vunpack.c.h.b16 %v556
    %v733 = vunpack.c.l.b16 %v557
    %v734 = vunpack.c.h.b16 %v557
    %v735 = vunpack.c.l.b16 %v558
    %v736 = vunpack.c.h.b16 %v558
    %v737 = vunpack.c.l.b16 %v559
    %v738 = vunpack.c.h.b16 %v559
    %v739 = vunpack.c.l.b16 %v560
    %v740 = vunpack.c.h.b16 %v560
    %v741 = vunpack.c.l.b16 %v561
    %v742 = vunpack.c.h.b16 %v561
    %v743 = vunpack.c.l.b16 %v562
    %v744 = vunpack.c.h.b16 %v562
    %v745 = vunpack.c.l.b16 %v563
    %v746 = vunpack.c.h.b16 %v563
    %v747 = vunpack.c.l.b16 %v564
    %v748 = vunpack.c.h.b16 %v564
    %v749 = vunpack.c.l.b16 %v565
    %v750 = vunpack.c.h.b16 %v565
    %v751 = vunpack.c.l.b16 %v566
    %v752 = vunpack.c.h.b16 %v566
    %v753 = vunpack.c.l.b16 %v567
    %v754 = vunpack.c.h.b16 %v567
    %v755 = vunpack.c.l.b16 %v568
    %v756 = vunpack.c.h.b16 %v568
    %v757 = vunpack.c.l.b16 %v569
    %v758 = vunpack.c.h.b16 %v569
    %v759 = vunpack.c.l.b16 %v570
    %v760 = vunpack.c.h.b16 %v570
    %v761 = vunpack.c.l.b16 %v571
    %v762 = vunpack.c.h.b16 %v571
    %v763 = vunpack.c.l.b16 %v572
    %v764 = vunpack.c.h.b16 %v572
    %v765 = vunpack.c.l.b16 %v573
    %v766 = vunpack.c.h.b16 %v573
    %v767 = vunpack.c.l.b16 %v574
    %v768 = vunpack.c.h.b16 %v574
    %v769 = vunpack.c.l.b16 %v575
    %v770 = vunpack.c.h.b16 %v575
    %v771 = vunpack.c.l.b16 %v576
    %v772 = vunpack.c.h.b16 %v576
    %v773 = vunpack.c.l.b16 %v577
    %v774 = vunpack.c.h.b16 %v577
    %v775 = vunpack.c.l.b16 %v578
    %v776 = vunpack.c.h.b16 %v578
    %v777 = vpack.c.b16 %v651, %v649
    %v778 = vpack.c.b16 %v652, %v650
    %v779 = vpack.c.b16 %v655, %v653
    %v780 = vpack.c.b16 %v656, %v654
    %v781 = vpack.c.b16 %v659, %v657
    %v782 = vpack.c.b16 %v660, %v658
    %v783 = vpack.c.b16 %v663, %v661
    %v784 = vpack.c.b16 %v664, %v662
    %v785 = vpack.c.b16 %v667, %v665
    %v786 = vpack.c.b16 %v668, %v666
    %v787 = vpack.c.b16 %v671, %v669
    %v788 = vpack.c.b16 %v672, %v670
    %v789 = vpack.c.b16 %v675, %v673
    %v790 = vpack.c.b16 %v676, %v674
    %v791 = vpack.c.b16 %v679, %v677
    %v792 = vpack.c.b16 %v680, %v678
    %v793 = vpack.c.b16 %v683, %v681
    %v794 = vpack.c.b16 %v684, %v682
    %v795 = vpack.c.b16 %v687, %v685
    %v796 = vpack.c.b16 %v688, %v686
    %v797 = vpack.c.b16 %v691, %v689
    %v798 = vpack.c.b16 %v692, %v690
    %v799 = vpack.c.b16 %v695, %v693
    %v800 = vpack.c.b16 %v696, %v694
    %v801 = vpack.c.b16 %v699, %v697
    %v802 = vpack.c.b16 %v700, %v698
    %v803 = vpack.c.b16 %v703, %v701
    %v804 = vpack.c.b16 %v704, %v702
    %v805 = vpack.c.b16 %v707, %v705
    %v806 = vpack.c.b16 %v708, %v706
    %v807 = vpack.c.b16 %v711, %v709
    %v808 = vpack.c.b16 %v712, %v710
    %v809 = vpack.c.b16 %v715, %v713
    %v810 = vpack.c.b16 %v716, %v714
    %v811 = vpack.c.b16 %v719, %v717
    %v812 = vpack.c.b16 %v720, %v718
    %v813 = vpack.c.b16 %v723, %v721
    %v814 = vpack.c.b16 %v724, %v722
    %v815 = vpack.c.b16 %v727, %v725
    %v816 = vpack.c.b16 %v728, %v726
    %v817 = vpack.c.b16 %v731, %v729
    %v818 = vpack.c.b16 %v732, %v730
    %v819 = vpack.c.b16 %v735, %v733
    %v820 = vpack.c.b16 %v736, %v734
    %v821 = vpack.c.b16 %v739, %v737
    %v822 = vpack.c.b16 %v740, %v738
    %v823 = vpack.c.b16 %v743, %v741
    %v824 = vpack.c.b16 %v744, %v742
    %v825 = vpack.c.b16 %v747, %v745
    %v826 = vpack.c.b16 %v748, %v746
    %v827 = vpack.c.b16 %v751, %v749
    %v828 = vpack.c.b16 %v752, %v750
    %v829 = vpack.c.b16 %v755, %v753
    %v830 = vpack.c.b16 %v756, %v754
    %v831 = vpack.c.b16 %v759, %v757
    %v832 = vpack.c.b16 %v760, %v758
    %v833 = vpack.c.b16 %v763, %v761
    %v834 = vpack.c.b16 %v764, %v762
    %v835 = vpack.c.b16 %v767, %v765
    %v836 = vpack.c.b16 %v768, %v766
    %v837 = vpack.c.b16 %v771, %v769
    %v838 = vpack.c.b16 %v772, %v770
    %v839 = vpack.c.b16 %v775, %v773
    %v840 = vpack.c.b16 %v776, %v774
    %905 = vmatpush.bf16.msra.mxu0 %v791
    %906 = vmatpush.bf16.msra.mxu0 %v789
    %907 = vmatpush.bf16.msra.mxu0 %v787
    %908 = vmatpush.bf16.msra.mxu0 %v785
    %909 = vmatpush.bf16.msra.mxu0 %v783
    %910 = vmatpush.bf16.msra.mxu0 %v781
    %911 = vmatpush.bf16.msra.mxu0 %v779
    %912 = vmatpush.bf16.msra.mxu0 %v777
    %913 = vmatmul.bf16.gmra.mxu0 %v511
    %v914 = vpop.f32.mrf.mxu0
    %v915 = vadd.f32 %v581, %v914
    %v916 = vpop.f32.mrf.mxu0
    %917 = vdwg.mxu0
    %918 = vmatpush.bf16.msra.mxu0 %v807
    %919 = vmatpush.bf16.msra.mxu0 %v805
    %920 = vmatpush.bf16.msra.mxu0 %v803
    %921 = vmatpush.bf16.msra.mxu0 %v801
    %922 = vmatpush.bf16.msra.mxu0 %v799
    %923 = vmatpush.bf16.msra.mxu0 %v797
    %924 = vmatpush.bf16.msra.mxu0 %v795
    %925 = vmatpush.bf16.msra.mxu0 %v793
    %926 = vmatmul.bf16.gmra.mxu0 %v512
    %v927 = vpop.f32.mrf.mxu0
    %v928 = vadd.f32 %v915, %v927
    %v929 = vpop.f32.mrf.mxu0
    %930 = vdwg.mxu0
    %931 = vmatpush.bf16.msra.mxu0 %v823
    %932 = vmatpush.bf16.msra.mxu0 %v821
    %933 = vmatpush.bf16.msra.mxu0 %v819
    %934 = vmatpush.bf16.msra.mxu0 %v817
    %935 = vmatpush.bf16.msra.mxu0 %v815
    %936 = vmatpush.bf16.msra.mxu0 %v813
    %937 = vmatpush.bf16.msra.mxu0 %v811
    %938 = vmatpush.bf16.msra.mxu0 %v809
    %939 = vmatmul.bf16.gmra.mxu0 %v513
    %v940 = vpop.f32.mrf.mxu0
    %v941 = vadd.f32 %v928, %v940
    %v942 = vpop.f32.mrf.mxu0
    %943 = vdwg.mxu0
    %944 = vmatpush.bf16.msra.mxu0 %v839
    %945 = vmatpush.bf16.msra.mxu0 %v837
    %946 = vmatpush.bf16.msra.mxu0 %v835
    %947 = vmatpush.bf16.msra.mxu0 %v833
    %948 = vmatpush.bf16.msra.mxu0 %v831
    %949 = vmatpush.bf16.msra.mxu0 %v829
    %950 = vmatpush.bf16.msra.mxu0 %v827
    %951 = vmatpush.bf16.msra.mxu0 %v825
    %952 = vmatmul.bf16.gmra.mxu0 %v514
    %v953 = vpop.f32.mrf.mxu0
    %v954 = vadd.f32 %v941, %v953
    %v955 = vpop.f32.mrf.mxu0
    %956 = vdwg.mxu0
    %957 = vmatpush.bf16.msra.mxu0 %v792
    %958 = vmatpush.bf16.msra.mxu0 %v790
    %959 = vmatpush.bf16.msra.mxu0 %v788
    %960 = vmatpush.bf16.msra.mxu0 %v786
    %961 = vmatpush.bf16.msra.mxu0 %v784
    %962 = vmatpush.bf16.msra.mxu0 %v782
    %963 = vmatpush.bf16.msra.mxu0 %v780
    %964 = vmatpush.bf16.msra.mxu0 %v778
    %965 = vmatmul.bf16.gmra.mxu0 %v511
    %v966 = vpop.f32.mrf.mxu0
    %v967 = vadd.f32 %v582, %v966
    %v968 = vpop.f32.mrf.mxu0
    %969 = vdwg.mxu0
    %970 = vmatpush.bf16.msra.mxu0 %v808
    %971 = vmatpush.bf16.msra.mxu0 %v806
    %972 = vmatpush.bf16.msra.mxu0 %v804
    %973 = vmatpush.bf16.msra.mxu0 %v802
    %974 = vmatpush.bf16.msra.mxu0 %v800
    %975 = vmatpush.bf16.msra.mxu0 %v798
    %976 = vmatpush.bf16.msra.mxu0 %v796
    %977 = vmatpush.bf16.msra.mxu0 %v794
    %978 = vmatmul.bf16.gmra.mxu0 %v512
    %v979 = vpop.f32.mrf.mxu0
    %v980 = vadd.f32 %v967, %v979
    %v981 = vpop.f32.mrf.mxu0
    %982 = vdwg.mxu0
    %983 = vmatpush.bf16.msra.mxu0 %v824
    %984 = vmatpush.bf16.msra.mxu0 %v822
    %985 = vmatpush.bf16.msra.mxu0 %v820
    %986 = vmatpush.bf16.msra.mxu0 %v818
    %987 = vmatpush.bf16.msra.mxu0 %v816
    %988 = vmatpush.bf16.msra.mxu0 %v814
    %989 = vmatpush.bf16.msra.mxu0 %v812
    %990 = vmatpush.bf16.msra.mxu0 %v810
    %991 = vmatmul.bf16.gmra.mxu0 %v513
    %v992 = vpop.f32.mrf.mxu0
    %v993 = vadd.f32 %v980, %v992
    %v994 = vpop.f32.mrf.mxu0
    %995 = vdwg.mxu0
    %996 = vmatpush.bf16.msra.mxu0 %v840
    %997 = vmatpush.bf16.msra.mxu0 %v838
    %998 = vmatpush.bf16.msra.mxu0 %v836
    %999 = vmatpush.bf16.msra.mxu0 %v834
    %1000 = vmatpush.bf16.msra.mxu0 %v832
    %1001 = vmatpush.bf16.msra.mxu0 %v830
    %1002 = vmatpush.bf16.msra.mxu0 %v828
    %1003 = vmatpush.bf16.msra.mxu0 %v826
    %1004 = vmatmul.bf16.gmra.mxu0 %v514
    %v1005 = vpop.f32.mrf.mxu0
    %v1006 = vadd.f32 %v993, %v1005
    %v1007 = vpop.f32.mrf.mxu0
    %1008 = vdwg.mxu0
    %v1009 = vmul.f32 %v954, 0.5
    %v1010 = vmul.f32 %v1006, 0.5
    %v1011 = vmul.f32 %v954, 0.70710677
    %v1012 = vmul.f32 %v1006, 0.70710677
    %v1013 = vand.u32 2147483647, %v1011
    %v1014 = vand.u32 2147483647, %v1012
    %v1015 = vmul.f32 %v1013, 0.3275911
    %v1016 = vmul.f32 %v1014, 0.3275911
    %v1017 = vadd.f32 %v1015, 1.0
    %v1018 = vadd.f32 %v1016, 1.0
    %v1019 = vrcp.pop %v1017
    %v1020 = vmul.f32 %v1017, %v1019
    %v1021 = vsub.f32 1.0, %v1020
    %v1022 = vmul.f32 %v1019, %v1021
    %v1023 = vadd.f32 %v1019, %v1022
    %vm1024 = vweird.f32 %v1017
    %vm1025 = vweird.f32 %v1019
    %vm1026 = vmor %vm1024, %vm1025
    %v1027 = vsel %vm1026, %v1019, %v1023
    %v1028 = vand.u32 2147483647, %v1017
    %vm1029 = vcmp.eq.f32.partialorder %v1028, 8.507059e+37
    %v1030 = vand.u32 %v1017, 2147483648
    %v1031 = vor.u32 1.1754944e-38, %v1030
    %v1032 = vsel %vm1029, %v1031, %v1027
    %v1033 = vmul.f32 1.0, %v1032
    %v1034 = vrcp.pop %v1018
    %v1035 = vmul.f32 %v1018, %v1034
    %v1036 = vsub.f32 1.0, %v1035
    %v1037 = vmul.f32 %v1034, %v1036
    %v1038 = vadd.f32 %v1034, %v1037
    %vm1039 = vweird.f32 %v1018
    %vm1040 = vweird.f32 %v1034
    %vm1041 = vmor %vm1039, %vm1040
    %v1042 = vsel %vm1041, %v1034, %v1038
    %v1043 = vand.u32 2147483647, %v1018
    %vm1044 = vcmp.eq.f32.partialorder %v1043, 8.507059e+37
    %v1045 = vand.u32 %v1018, 2147483648
    %v1046 = vor.u32 1.1754944e-38, %v1045
    %v1047 = vsel %vm1044, %v1046, %v1042
    %v1048 = vmul.f32 1.0, %v1047
    %v1049 = vmul.f32 %v1033, 1.0614054
    %v1050 = vmul.f32 %v1048, 1.0614054
    %v1051 = vsub.f32 %v1049, 1.4531521
    %v1052 = vsub.f32 %v1050, 1.4531521
    %v1053 = vmul.f32 %v1051, %v1033
    %v1054 = vmul.f32 %v1052, %v1048
    %v1055 = vadd.f32 %v1053, 1.4214138
    %v1056 = vadd.f32 %v1054, 1.4214138
    %v1057 = vmul.f32 %v1055, %v1033
    %v1058 = vmul.f32 %v1056, %v1048
    %v1059 = vsub.f32 %v1057, 0.28449672
    %v1060 = vsub.f32 %v1058, 0.28449672
    %v1061 = vmul.f32 %v1059, %v1033
    %v1062 = vmul.f32 %v1060, %v1048
    %v1063 = vadd.f32 %v1061, 0.2548296
    %v1064 = vadd.f32 %v1062, 0.2548296
    %v1065 = vmul.f32 %v1063, %v1033
    %v1066 = vmul.f32 %v1064, %v1048
    %v1067 = vsub.f32 0.0, %v1011
    %v1068 = vsub.f32 0.0, %v1012
    %v1069 = vmul.f32 %v1067, %v1011
    %v1070 = vmul.f32 %v1068, %v1012
    %v1071 = vmul.f32 %v1069, 1.442695
    %v1072 = vpow.pop %v1071
    %v1073 = vmul.f32 %v1070, 1.442695
    %v1074 = vpow.pop %v1073
    %v1075 = vmul.f32 %v1065, %v1072
    %v1076 = vmul.f32 %v1066, %v1074
    %v1077 = vsub.f32 1.0, %v1075
    %v1078 = vsub.f32 1.0, %v1076
    %vm1079 = vcmp.ge.f32.partialorder %v1011, 0.0
    %vm1080 = vcmp.ge.f32.partialorder %v1012, 0.0
    %v1081 = vsub.f32 0.0, %v1077
    %v1082 = vsub.f32 0.0, %v1078
    %v1083 = vsel %vm1079, %v1077, %v1081
    %v1084 = vsel %vm1080, %v1078, %v1082
    %v1085 = vadd.f32 %v1083, 1.0
    %v1086 = vadd.f32 %v1084, 1.0
    %v1087 = vmul.f32 %v1009, %v1085
    %v1088 = vmul.f32 %v1010, %v1086
    %v1089 = vpack.c.bf16 %v1087, %v1087
    %v1090 = vpack.c.bf16 %v1088, %v1088
    %v1091 = vld [vmem:[#allocation6] sm:$0xf]
    %v1092 = vld [vmem:[#allocation6 + $0x4] sm:$0xf]
    %v1093 = vld [vmem:[#allocation6 + $0x8] sm:$0xf]
    %v1094 = vld [vmem:[#allocation6 + $0xc] sm:$0xf]
    %v1095 = vld [vmem:[#allocation6 + $0x10] sm:$0xf]
    %v1096 = vld [vmem:[#allocation6 + $0x14] sm:$0xf]
    %v1097 = vld [vmem:[#allocation6 + $0x18] sm:$0xf]
    %v1098 = vld [vmem:[#allocation6 + $0x1c] sm:$0xf]
    %v1099 = vld [vmem:[#allocation6 + $0x20] sm:$0xf]
    %v1100 = vld [vmem:[#allocation6 + $0x24] sm:$0xf]
    %v1101 = vld [vmem:[#allocation6 + $0x28] sm:$0xf]
    %v1102 = vld [vmem:[#allocation6 + $0x2c] sm:$0xf]
    %v1103 = vld [vmem:[#allocation6 + $0x30] sm:$0xf]
    %v1104 = vld [vmem:[#allocation6 + $0x34] sm:$0xf]
    %v1105 = vld [vmem:[#allocation6 + $0x38] sm:$0xf]
    %v1106 = vld [vmem:[#allocation6 + $0x3c] sm:$0xf]
    %v1107 = vld [vmem:[#allocation6 + $0x40] sm:$0xf]
    %v1108 = vld [vmem:[#allocation6 + $0x44] sm:$0xf]
    %v1109 = vld [vmem:[#allocation6 + $0x48] sm:$0xf]
    %v1110 = vld [vmem:[#allocation6 + $0x4c] sm:$0xf]
    %v1111 = vld [vmem:[#allocation6 + $0x50] sm:$0xf]
    %v1112 = vld [vmem:[#allocation6 + $0x54] sm:$0xf]
    %v1113 = vld [vmem:[#allocation6 + $0x58] sm:$0xf]
    %v1114 = vld [vmem:[#allocation6 + $0x5c] sm:$0xf]
    %v1115 = vld [vmem:[#allocation6 + $0x60] sm:$0xf]
    %v1116 = vld [vmem:[#allocation6 + $0x64] sm:$0xf]
    %v1117 = vld [vmem:[#allocation6 + $0x68] sm:$0xf]
    %v1118 = vld [vmem:[#allocation6 + $0x6c] sm:$0xf]
    %v1119 = vld [vmem:[#allocation6 + $0x70] sm:$0xf]
    %v1120 = vld [vmem:[#allocation6 + $0x74] sm:$0xf]
    %v1121 = vld [vmem:[#allocation6 + $0x78] sm:$0xf]
    %v1122 = vld [vmem:[#allocation6 + $0x7c] sm:$0xf]
    %v1123 = vld [vmem:[%s6] sm:$0x1]
    %v1125 = vperm.slane %v1123, 0
    %v1159 = vunpack.c.l.b16 %v1091
    %v1160 = vunpack.c.l.b16 %v1092
    %v1161 = vunpack.c.l.b16 %v1093
    %v1162 = vunpack.c.l.b16 %v1094
    %v1163 = vunpack.c.l.b16 %v1095
    %v1164 = vunpack.c.l.b16 %v1096
    %v1165 = vunpack.c.l.b16 %v1097
    %v1166 = vunpack.c.l.b16 %v1098
    %v1167 = vunpack.c.l.b16 %v1099
    %v1168 = vunpack.c.l.b16 %v1100
    %v1169 = vunpack.c.l.b16 %v1101
    %v1170 = vunpack.c.l.b16 %v1102
    %v1171 = vunpack.c.l.b16 %v1103
    %v1172 = vunpack.c.l.b16 %v1104
    %v1173 = vunpack.c.l.b16 %v1105
    %v1174 = vunpack.c.l.b16 %v1106
    %v1175 = vunpack.c.l.b16 %v1107
    %v1176 = vunpack.c.l.b16 %v1108
    %v1177 = vunpack.c.l.b16 %v1109
    %v1178 = vunpack.c.l.b16 %v1110
    %v1179 = vunpack.c.l.b16 %v1111
    %v1180 = vunpack.c.l.b16 %v1112
    %v1181 = vunpack.c.l.b16 %v1113
    %v1182 = vunpack.c.l.b16 %v1114
    %v1183 = vunpack.c.l.b16 %v1115
    %v1184 = vunpack.c.l.b16 %v1116
    %v1185 = vunpack.c.l.b16 %v1117
    %v1186 = vunpack.c.l.b16 %v1118
    %v1187 = vunpack.c.l.b16 %v1119
    %v1188 = vunpack.c.l.b16 %v1120
    %v1189 = vunpack.c.l.b16 %v1121
    %v1190 = vunpack.c.l.b16 %v1122
    %v1191 = vpack.c.b16 %v1160, %v1159
    %v1192 = vpack.c.b16 %v1162, %v1161
    %v1193 = vpack.c.b16 %v1164, %v1163
    %v1194 = vpack.c.b16 %v1166, %v1165
    %v1195 = vpack.c.b16 %v1168, %v1167
    %v1196 = vpack.c.b16 %v1170, %v1169
    %v1197 = vpack.c.b16 %v1172, %v1171
    %v1198 = vpack.c.b16 %v1174, %v1173
    %v1199 = vpack.c.b16 %v1176, %v1175
    %v1200 = vpack.c.b16 %v1178, %v1177
    %v1201 = vpack.c.b16 %v1180, %v1179
    %v1202 = vpack.c.b16 %v1182, %v1181
    %v1203 = vpack.c.b16 %v1184, %v1183
    %v1204 = vpack.c.b16 %v1186, %v1185
    %v1205 = vpack.c.b16 %v1188, %v1187
    %v1206 = vpack.c.b16 %v1190, %v1189
    %1223 = vmatpush.bf16.msra.mxu0 %v1198
    %1224 = vmatpush.bf16.msra.mxu0 %v1197
    %1225 = vmatpush.bf16.msra.mxu0 %v1196
    %1226 = vmatpush.bf16.msra.mxu0 %v1195
    %1227 = vmatpush.bf16.msra.mxu0 %v1194
    %1228 = vmatpush.bf16.msra.mxu0 %v1193
    %1229 = vmatpush.bf16.msra.mxu0 %v1192
    %1230 = vmatpush.bf16.msra.mxu0 %v1191
    %1231 = vmatmul.bf16.gmra.mxu0 %v1089
    %v1232 = vpop.f32.mrf.mxu0
    %v1233 = vadd.f32 %v1125, %v1232
    %v1234 = vpop.f32.mrf.mxu0
    %1235 = vdwg.mxu0
    %1236 = vmatpush.bf16.msra.mxu0 %v1206
    %1237 = vmatpush.bf16.msra.mxu0 %v1205
    %1238 = vmatpush.bf16.msra.mxu0 %v1204
    %1239 = vmatpush.bf16.msra.mxu0 %v1203
    %1240 = vmatpush.bf16.msra.mxu0 %v1202
    %1241 = vmatpush.bf16.msra.mxu0 %v1201
    %1242 = vmatpush.bf16.msra.mxu0 %v1200
    %1243 = vmatpush.bf16.msra.mxu0 %v1199
    %1244 = vmatmul.bf16.gmra.mxu0 %v1090
    %v1245 = vpop.f32.mrf.mxu0
    %v1246 = vadd.f32 %v1233, %v1245
    %v1247 = vpop.f32.mrf.mxu0
    %1248 = vdwg.mxu0
    %v1249 = vmul.f32 %v1246, 0.5
    %v1250 = vmul.f32 %v1246, 0.70710677
    %v1251 = vand.u32 2147483647, %v1250
    %v1252 = vmul.f32 %v1251, 0.3275911
    %v1253 = vadd.f32 %v1252, 1.0
    %v1254 = vrcp.pop %v1253
    %v1255 = vmul.f32 %v1253, %v1254
    %v1256 = vsub.f32 1.0, %v1255
    %v1257 = vmul.f32 %v1254, %v1256
    %v1258 = vadd.f32 %v1254, %v1257
    %vm1259 = vweird.f32 %v1253
    %vm1260 = vweird.f32 %v1254
    %vm1261 = vmor %vm1259, %vm1260
    %v1262 = vsel %vm1261, %v1254, %v1258
    %v1263 = vand.u32 2147483647, %v1253
    %vm1264 = vcmp.eq.f32.partialorder %v1263, 8.507059e+37
    %v1265 = vand.u32 %v1253, 2147483648
    %v1266 = vor.u32 1.1754944e-38, %v1265
    %v1267 = vsel %vm1264, %v1266, %v1262
    %v1268 = vmul.f32 1.0, %v1267
    %v1269 = vmul.f32 %v1268, 1.0614054
    %v1270 = vsub.f32 %v1269, 1.4531521
    %v1271 = vmul.f32 %v1270, %v1268
    %v1272 = vadd.f32 %v1271, 1.4214138
    %v1273 = vmul.f32 %v1272, %v1268
    %v1274 = vsub.f32 %v1273, 0.28449672
    %v1275 = vmul.f32 %v1274, %v1268
    %v1276 = vadd.f32 %v1275, 0.2548296
    %v1277 = vmul.f32 %v1276, %v1268
    %v1278 = vsub.f32 0.0, %v1250
    %v1279 = vmul.f32 %v1278, %v1250
    %v1280 = vmul.f32 %v1279, 1.442695
    %v1281 = vpow.pop %v1280
    %v1282 = vmul.f32 %v1277, %v1281
    %v1283 = vsub.f32 1.0, %v1282
    %vm1284 = vcmp.ge.f32.partialorder %v1250, 0.0
    %v1285 = vsub.f32 0.0, %v1283
    %v1286 = vsel %vm1284, %v1283, %v1285
    %v1287 = vadd.f32 %v1286, 1.0
    %v1288 = vmul.f32 %v1249, %v1287
    %v1289 = vpack.c.bf16 %v1288, %v1288
    %v1290 = vld [vmem:[#allocation7] sm:$0xf]
    %v1291 = vld [vmem:[#allocation7 + $0x4] sm:$0xf]
    %v1292 = vld [vmem:[#allocation7 + $0x8] sm:$0xf]
    %v1293 = vld [vmem:[#allocation7 + $0xc] sm:$0xf]
    %v1294 = vld [vmem:[#allocation7 + $0x10] sm:$0xf]
    %v1295 = vld [vmem:[#allocation7 + $0x14] sm:$0xf]
    %v1296 = vld [vmem:[#allocation7 + $0x18] sm:$0xf]
    %v1297 = vld [vmem:[#allocation7 + $0x1c] sm:$0xf]
    %v1298 = vld [vmem:[#allocation7 + $0x20] sm:$0xf]
    %v1299 = vld [vmem:[#allocation7 + $0x24] sm:$0xf]
    %v1300 = vld [vmem:[#allocation7 + $0x28] sm:$0xf]
    %v1301 = vld [vmem:[#allocation7 + $0x2c] sm:$0xf]
    %v1302 = vld [vmem:[#allocation7 + $0x30] sm:$0xf]
    %v1303 = vld [vmem:[#allocation7 + $0x34] sm:$0xf]
    %v1304 = vld [vmem:[#allocation7 + $0x38] sm:$0xf]
    %v1305 = vld [vmem:[#allocation7 + $0x3c] sm:$0xf]
    %v1306 = vld [vmem:[%s8] sm:$0x1]
    %v1308 = vperm.slane %v1306, 0
    %v1326 = vunpack.c.l.b16 %v1290
    %v1327 = vunpack.c.l.b16 %v1291
    %v1328 = vunpack.c.l.b16 %v1292
    %v1329 = vunpack.c.l.b16 %v1293
    %v1330 = vunpack.c.l.b16 %v1294
    %v1331 = vunpack.c.l.b16 %v1295
    %v1332 = vunpack.c.l.b16 %v1296
    %v1333 = vunpack.c.l.b16 %v1297
    %v1334 = vunpack.c.l.b16 %v1298
    %v1335 = vunpack.c.l.b16 %v1299
    %v1336 = vunpack.c.l.b16 %v1300
    %v1337 = vunpack.c.l.b16 %v1301
    %v1338 = vunpack.c.l.b16 %v1302
    %v1339 = vunpack.c.l.b16 %v1303
    %v1340 = vunpack.c.l.b16 %v1304
    %v1341 = vunpack.c.l.b16 %v1305
    %v1342 = vpack.c.b16 %v1327, %v1326
    %v1343 = vpack.c.b16 %v1329, %v1328
    %v1344 = vpack.c.b16 %v1331, %v1330
    %v1345 = vpack.c.b16 %v1333, %v1332
    %v1346 = vpack.c.b16 %v1335, %v1334
    %v1347 = vpack.c.b16 %v1337, %v1336
    %v1348 = vpack.c.b16 %v1339, %v1338
    %v1349 = vpack.c.b16 %v1341, %v1340
    %1358 = vmatpush.bf16.msra.mxu0 %v1349
    %1359 = vmatpush.bf16.msra.mxu0 %v1348
    %1360 = vmatpush.bf16.msra.mxu0 %v1347
    %1361 = vmatpush.bf16.msra.mxu0 %v1346
    %1362 = vmatpush.bf16.msra.mxu0 %v1345
    %1363 = vmatpush.bf16.msra.mxu0 %v1344
    %1364 = vmatpush.bf16.msra.mxu0 %v1343
    %1365 = vmatpush.bf16.msra.mxu0 %v1342
    %1366 = vmatmul.bf16.gmra.mxu0 %v1289
    %v1367 = vpop.f32.mrf.mxu0
    %v1368 = vadd.f32 %v1308, %v1367
    %v1369 = vpop.f32.mrf.mxu0
    %1370 = vdwg.mxu0
    %v1371 = vmul.f32 %v1368, 0.5
    %v1372 = vtanh.pop %v1371
    %v1373 = vadd.f32 %v1372, 1.0
    %v1374 = vmul.f32 %v1373, 0.5
    %1375 = vst [vmem:[%s9] sm:$0xff] %v1374
    // Predicated region
    $region54: #{mlp_forward.1} parent=1 // pred_check
      _
    $region55: #{mlp_forward.1} parent=1 // pred_check_branch
      %1377 = sbr.rel (0) target = $region57
    $region56: #{mlp_forward.1} parent=1 // pred_region
      _
    $region57: #{mlp_forward.1} parent=1 // pred_fallthru
      _
    // Predicated region
    $region58: #{mlp_forward.1} parent=1 // pred_check
      _
    $region59: #{mlp_forward.1} parent=1 // pred_check_branch
      %1379 = sbr.rel (0) target = $region61
    $region60: #{mlp_forward.1} parent=1 // pred_region
      _
    $region61: #{mlp_forward.1} parent=1 // pred_fallthru
      _
    %1380 = vsyncpa [#allocation3], 1
    %1381 = vsyncpa [#allocation5], 1
    %1382 = vsyncpa [#allocation8], 1

</llo_original>
